<compile_context>
chip_gen: v5e
topology: v5e:2x2
jax: 0.10.0
libtpu: 0.0.40
codegen_flags: <defaults>
</compile_context>

<pallas_src>
import functools

import jax
import jax.numpy as jnp
from jax.experimental import pallas as pl
from jax.experimental.pallas import tpu as pltpu


_F32_BLOCK_TARGET_BYTES = 2 * 1024 * 1024   # per-input block target (f32-equivalent)
_MAX_TB_ROWS = 8192                         # bounds lane-padded (tb, 1) temporaries
_NUM_CORE_SPLITS = 2                        # v7x: 2 TensorCores/chip; harmless on 1-TC chips


def _round_up(x, m):
    return ((x + m - 1) // m) * m


def _contrastive_loss_kernel(x1_ref, x2_ref, out_ref, *, margin, eps, total_b,
                             tb, steps_per_core):
    c = pl.program_id(0)   # core split ("parallel")
    i = pl.program_id(1)   # per-core block sweep ("arbitrary")

    @pl.when(i == 0)
    def _init():
        out_ref[...] = jnp.zeros_like(out_ref)

    # Cast to f32 in-kernel (VPU work, no extra HBM pass) so bf16/f16 inputs
    # keep precision.
    x1 = x1_ref[...].astype(jnp.float32)
    x2 = x2_ref[...].astype(jnp.float32)
    d = x1 - x2                                            # (tb, D)
    dist = jnp.sum(d * d, axis=-1, keepdims=True)          # (tb, 1)
    s = jnp.sqrt(dist + eps)
    l = jnp.maximum(margin - s, 0.0)
    lsq = l * l                                            # (tb, 1)

    # Logical (pre-clamp) block index and first-row offset for this step.
    blk = c * steps_per_core + i
    row0 = blk * tb

    # Hot path: block fully inside the true batch -> unmasked tree reduce +
    # a single f32 accumulate into the resident per-core output block.
    @pl.when(row0 + tb <= total_b)
    def _full():
        out_ref[0:1, 0:1, 0:1] += jnp.sum(lsq, keepdims=True).reshape(1, 1, 1)

    # Boundary block (ragged tail) or clamped duplicate block: mask rows that
    # lie past the true batch so garbage / duplicated rows contribute exactly 0.
    @pl.when(row0 + tb > total_b)
    def _ragged():
        row = row0 + jax.lax.broadcasted_iota(jnp.int32, (tb, 1), 0)
        masked = jnp.where(row < total_b, lsq, 0.0)
        out_ref[0:1, 0:1, 0:1] += jnp.sum(masked, keepdims=True).reshape(1, 1, 1)


def contrastive_loss_diff(output_c1, output_c2, *, margin=0.5, eps=1e-9, tb=None):
    """Pallas implementation of ContrastiveLoss_diff.forward. Returns a scalar."""
    assert output_c1.shape == output_c2.shape
    assert output_c1.dtype == output_c2.dtype

    # mean() is over all leading dims; flatten them into one batch axis.
    if output_c1.ndim != 2:
        D_last = output_c1.shape[-1]
        output_c1 = output_c1.reshape(-1, D_last)
        output_c2 = output_c2.reshape(-1, D_last)

    B, D = output_c1.shape
    itemsize = jnp.dtype(output_c1.dtype).itemsize
    # Sublane multiple for the input dtype: 8 (f32), 16 (bf16/f16), 32 (int8/fp8).
    sub = max(8, 32 // itemsize)

    if tb is None:
        # Size the tile by bytes: ~2 MiB of f32-equivalent data per input block
        # keeps the 0.35 us/step overhead well under the DMA time on every
        # generation.  The 8192-row cap bounds the lane-padded (tb, 1)
        # per-row intermediates (tb*512 B each in VMEM) for very small D.
        tb = _F32_BLOCK_TARGET_BYTES // (D * 4)
        tb = min(tb, _MAX_TB_ROWS)
        tb = min(tb, _round_up(B, sub))
        tb = max(sub, (tb // sub) * sub)
    else:
        tb = max(sub, _round_up(int(tb), sub))

    n_blocks = pl.cdiv(B, tb)
    num_cores = _NUM_CORE_SPLITS if n_blocks >= 2 else 1
    steps_per_core = pl.cdiv(n_blocks, num_cores)

    kernel = functools.partial(
        _contrastive_loss_kernel,
        margin=float(margin), eps=float(eps), total_b=B, tb=tb,
        steps_per_core=steps_per_core,
    )

    def in_map(c, i):
        # Clamp so the DMA never reads a fully out-of-range block; the kernel
        # masks the duplicated rows (their logical row index is >= B).
        return (jnp.minimum(c * steps_per_core + i, n_blocks - 1), 0)

    partials = pl.pallas_call(
        kernel,
        # One (8,128)-aligned partial-sum block per core; element [c,0,0] holds
        # the core's running sum.
        out_shape=jax.ShapeDtypeStruct((num_cores, 8, 128), jnp.float32),
        grid_spec=pltpu.PrefetchScalarGridSpec(
            num_scalar_prefetch=0,
            grid=(num_cores, steps_per_core),
            in_specs=[
                pl.BlockSpec((tb, D), in_map),
                pl.BlockSpec((tb, D), in_map),
            ],
            out_specs=pl.BlockSpec((1, 8, 128), lambda c, i: (c, 0, 0)),
        ),
        compiler_params=pltpu.CompilerParams(
            dimension_semantics=("parallel", "arbitrary"),
            vmem_limit_bytes=48 * 1024 * 1024,
        ),
    )(output_c1, output_c2)

    return jnp.sum(partials[:, 0, 0]) / float(B)


def _reference(x1, x2, margin=0.5, eps=1e-9):
    x1 = x1.reshape(-1, x1.shape[-1]).astype(jnp.float32)
    x2 = x2.reshape(-1, x2.shape[-1]).astype(jnp.float32)
    dist = jnp.sum((x1 - x2) ** 2, axis=-1)
    return jnp.mean(jnp.maximum(margin - jnp.sqrt(dist + eps), 0.0) ** 2)


if __name__ == "__main__":
    key = jax.random.PRNGKey(0)
    k1, k2, k3, k4 = jax.random.split(key, 4)

    # Small (batch, embedding_dim) inputs; x2 close to x1 so distances straddle
    # the margin and the loss is non-trivial.
    B, D = 64, 32
    x1 = jax.random.normal(k1, (B, D), dtype=jnp.float32)
    x2 = x1 + 0.08 * jax.random.normal(k2, (B, D), dtype=jnp.float32)

    # Run 1: auto tile (single grid step for this size).
    loss = jax.block_until_ready(contrastive_loss_diff(x1, x2, margin=0.5))
    ref = _reference(x1, x2, margin=0.5)
    assert jnp.allclose(loss, ref, rtol=1e-5, atol=1e-6), (loss, ref)

    # Run 2: forced small tile with a ragged batch — exercises the per-core
    # split, the masked boundary block, and the clamped duplicate block.
    Br = 40
    x1r, x2r = x1[:Br], x2[:Br]
    loss_r = jax.block_until_ready(
        contrastive_loss_diff(x1r, x2r, margin=0.5, tb=16))
    ref_r = _reference(x1r, x2r, margin=0.5)
    assert jnp.allclose(loss_r, ref_r, rtol=1e-5, atol=1e-6), (loss_r, ref_r)

    # Run 3: larger ragged batch on the auto-sized tile — exercises the
    # byte-sized tile, both core partial sums, and the ragged last block.
    Bl = 20000
    x1l = jax.random.normal(k3, (Bl, D), dtype=jnp.float32)
    x2l = x1l + 0.08 * jax.random.normal(k4, (Bl, D), dtype=jnp.float32)
    loss_l = jax.block_until_ready(contrastive_loss_diff(x1l, x2l, margin=0.5))
    ref_l = _reference(x1l, x2l, margin=0.5)
    assert jnp.allclose(loss_l, ref_l, rtol=1e-5, atol=1e-6), (loss_l, ref_l)

    print("KERNEL_OK")
</pallas_src>

<mosaic_0001>
module attributes {stable_mosaic.version = 11 : i64} {
  func.func @_contrastive_loss_kernel(%arg0: i32, %arg1: i32, %arg2: memref<64x32xf32, #tpu.memory_space<vmem>>, %arg3: memref<64x32xf32, #tpu.memory_space<vmem>>, %arg4: memref<1x8x128xf32, #tpu.memory_space<vmem>>) attributes {dimension_semantics = [#tpu.dimension_semantics<parallel>, #tpu.dimension_semantics<arbitrary>], iteration_bounds = array<i64: 1, 1>, scalar_prefetch = 0 : i64, scratch_operands = 0 : i64, tpu.core_type = #tpu.core_type<tc>, window_params = [{transform_indices = @transform_0, window_bounds = array<i64: 64, 32>}, {transform_indices = @transform_1, window_bounds = array<i64: 64, 32>}, {transform_indices = @transform_2, window_bounds = array<i64: 1, 8, 128>}]} {
    %c0_i32 = arith.constant 0 : i32
    %0 = arith.cmpi eq, %arg1, %c0_i32 : i32
    %1 = arith.extui %0 : i1 to i32
    %c0_i32_0 = arith.constant 0 : i32
    %2 = arith.cmpi ne, %1, %c0_i32_0 : i32
    scf.if %2 {
      %cst_13 = arith.constant 0.000000e+00 : f32
      %28 = vector.broadcast %cst_13 : f32 to vector<1x8x128xf32>
      %c0_14 = arith.constant 0 : index
      %c0_15 = arith.constant 0 : index
      %c0_16 = arith.constant 0 : index
      %29 = vector.load %arg4[%c0_14, %c0_15, %c0_16] : memref<1x8x128xf32, #tpu.memory_space<vmem>>, vector<1x8x128xf32>
      tpu.vector_store %arg4[%c0_14, %c0_15, %c0_16], %28 {strides = array<i32>} : memref<1x8x128xf32, #tpu.memory_space<vmem>>, vector<1x8x128xf32>,
    } else {
    }
    %c0 = arith.constant 0 : index
    %c0_1 = arith.constant 0 : index
    %3 = vector.load %arg2[%c0, %c0_1] : memref<64x32xf32, #tpu.memory_space<vmem>>, vector<64x32xf32>
    %c0_2 = arith.constant 0 : index
    %c0_3 = arith.constant 0 : index
    %4 = vector.load %arg3[%c0_2, %c0_3] : memref<64x32xf32, #tpu.memory_space<vmem>>, vector<64x32xf32>
    %5 = arith.subf %3, %4 : vector<64x32xf32>
    %6 = arith.mulf %5, %5 : vector<64x32xf32>
    %cst = arith.constant dense<0.000000e+00> : vector<64xf32>
    %7 = vector.multi_reduction <add>, %6, %cst [1] : vector<64x32xf32> to vector<64xf32>
    %8 = vector.shape_cast %7 : vector<64xf32> to vector<64x1xf32>
    %cst_4 = arith.constant 9.99999971E-10 : f32
    %9 = vector.broadcast %cst_4 : f32 to vector<64x1xf32>
    %10 = arith.addf %8, %9 : vector<64x1xf32>
    %11 = math.sqrt %10 : vector<64x1xf32>
    %cst_5 = arith.constant 5.000000e-01 : f32
    %12 = vector.broadcast %cst_5 : f32 to vector<64x1xf32>
    %13 = arith.subf %12, %11 : vector<64x1xf32>
    %cst_6 = arith.constant 0.000000e+00 : f32
    %14 = vector.broadcast %cst_6 : f32 to vector<64x1xf32>
    %15 = arith.maximumf %13, %14 : vector<64x1xf32>
    %16 = arith.mulf %15, %15 : vector<64x1xf32>
    %c1_i32 = arith.constant 1 : i32
    %17 = arith.muli %arg0, %c1_i32 : i32
    %18 = arith.addi %17, %arg1 : i32
    %c64_i32 = arith.constant 64 : i32
    %19 = arith.muli %18, %c64_i32 : i32
    %c64_i32_7 = arith.constant 64 : i32
    %20 = arith.addi %19, %c64_i32_7 : i32
    %c64_i32_8 = arith.constant 64 : i32
    %21 = arith.cmpi sle, %20, %c64_i32_8 : i32
    %22 = arith.extui %21 : i1 to i32
    %c0_i32_9 = arith.constant 0 : i32
    %23 = arith.cmpi ne, %22, %c0_i32_9 : i32
    scf.if %23 {
      %c0_13 = arith.constant 0 : index
      %c0_14 = arith.constant 0 : index
      %c0_15 = arith.constant 0 : index
      %28 = vector.load %arg4[%c0_13, %c0_14, %c0_15] : memref<1x8x128xf32, #tpu.memory_space<vmem>>, vector<1x1x1xf32>
      %29 = vector.shape_cast %16 : vector<64x1xf32> to vector<1x64x1xf32>
      %cst_16 = arith.constant dense<0.000000e+00> : vector<1xf32>
      %30 = vector.multi_reduction <add>, %29, %cst_16 [1, 2] : vector<1x64x1xf32> to vector<1xf32>
      %31 = vector.shape_cast %30 : vector<1xf32> to vector<1x1x1xf32>
      %32 = vector.extract %31[0, 0, 0] : f32 from vector<1x1x1xf32>
      %33 = vector.broadcast %32 : f32 to vector<1x1xf32>
      %34 = vector.shape_cast %33 : vector<1x1xf32> to vector<1x1x1xf32>
      %35 = arith.addf %28, %34 : vector<1x1x1xf32>
      %c0_17 = arith.constant 0 : index
      %c0_18 = arith.constant 0 : index
      %c0_19 = arith.constant 0 : index
      %36 = vector.load %arg4[%c0_17, %c0_18, %c0_19] : memref<1x8x128xf32, #tpu.memory_space<vmem>>, vector<1x1x1xf32>
      tpu.vector_store %arg4[%c0_17, %c0_18, %c0_19], %35 {strides = array<i32>} : memref<1x8x128xf32, #tpu.memory_space<vmem>>, vector<1x1x1xf32>,
    } else {
    }
    %c64_i32_10 = arith.constant 64 : i32
    %24 = arith.addi %19, %c64_i32_10 : i32
    %c64_i32_11 = arith.constant 64 : i32
    %25 = arith.cmpi sgt, %24, %c64_i32_11 : i32
    %26 = arith.extui %25 : i1 to i32
    %c0_i32_12 = arith.constant 0 : i32
    %27 = arith.cmpi ne, %26, %c0_i32_12 : i32
    scf.if %27 {
      %28 = tpu.iota {dimensions = array<i32: 0>} : vector<64x1xi32>
      %29 = vector.broadcast %19 : i32 to vector<64x1xi32>
      %30 = arith.addi %29, %28 : vector<64x1xi32>
      %c64_i32_13 = arith.constant 64 : i32
      %31 = vector.broadcast %c64_i32_13 : i32 to vector<64x1xi32>
      %32 = arith.cmpi slt, %30, %31 : vector<64x1xi32>
      %cst_14 = arith.constant 0.000000e+00 : f32
      %33 = vector.broadcast %cst_14 : f32 to vector<64x1xf32>
      %34 = arith.select %32, %16, %33 : vector<64x1xi1>, vector<64x1xf32>
      %c0_15 = arith.constant 0 : index
      %c0_16 = arith.constant 0 : index
      %c0_17 = arith.constant 0 : index
      %35 = vector.load %arg4[%c0_15, %c0_16, %c0_17] : memref<1x8x128xf32, #tpu.memory_space<vmem>>, vector<1x1x1xf32>
      %36 = vector.shape_cast %34 : vector<64x1xf32> to vector<1x64x1xf32>
      %cst_18 = arith.constant dense<0.000000e+00> : vector<1xf32>
      %37 = vector.multi_reduction <add>, %36, %cst_18 [1, 2] : vector<1x64x1xf32> to vector<1xf32>
      %38 = vector.shape_cast %37 : vector<1xf32> to vector<1x1x1xf32>
      %39 = vector.extract %38[0, 0, 0] : f32 from vector<1x1x1xf32>
      %40 = vector.broadcast %39 : f32 to vector<1x1xf32>
      %41 = vector.shape_cast %40 : vector<1x1xf32> to vector<1x1x1xf32>
      %42 = arith.addf %35, %41 : vector<1x1x1xf32>
      %c0_19 = arith.constant 0 : index
      %c0_20 = arith.constant 0 : index
      %c0_21 = arith.constant 0 : index
      %43 = vector.load %arg4[%c0_19, %c0_20, %c0_21] : memref<1x8x128xf32, #tpu.memory_space<vmem>>, vector<1x1x1xf32>
      tpu.vector_store %arg4[%c0_19, %c0_20, %c0_21], %42 {strides = array<i32>} : memref<1x8x128xf32, #tpu.memory_space<vmem>>, vector<1x1x1xf32>,
    } else {
    }
    return
  }
  func.func @transform_0(%arg0: i32, %arg1: i32) -> (i32, i32) {
    %c1_i32 = arith.constant 1 : i32
    %0 = arith.muli %arg0, %c1_i32 : i32
    %1 = arith.addi %0, %arg1 : i32
    %c0_i32 = arith.constant 0 : i32
    %2 = arith.minsi %1, %c0_i32 : i32
    %c0_i32_0 = arith.constant 0 : i32
    %c0_i32_1 = arith.constant 0 : i32
    return %2, %c0_i32_0 : i32, i32
  }
  func.func @transform_1(%arg0: i32, %arg1: i32) -> (i32, i32) {
    %c1_i32 = arith.constant 1 : i32
    %0 = arith.muli %arg0, %c1_i32 : i32
    %1 = arith.addi %0, %arg1 : i32
    %c0_i32 = arith.constant 0 : i32
    %2 = arith.minsi %1, %c0_i32 : i32
    %c0_i32_0 = arith.constant 0 : i32
    %c0_i32_1 = arith.constant 0 : i32
    return %2, %c0_i32_0 : i32, i32
  }
  func.func @transform_2(%arg0: i32, %arg1: i32) -> (i32, i32, i32) {
    %c0_i32 = arith.constant 0 : i32
    %c0_i32_0 = arith.constant 0 : i32
    %c0_i32_1 = arith.constant 0 : i32
    return %arg0, %c0_i32, %c0_i32_0 : i32, i32, i32
  }
}

</mosaic_0001>

<llo_original>
// kernel: tpu_custom_call.1
$region0: #{tpu_custom_call.1}
  #allocation0 [shape = 'u32[]', space=smem, size = 0x4, offset = 0x4, fixed_abs, tag = 'smem constant byte address 0x4 - core index']
  #allocation1 [shape = 'u32[72,128]{1,0:T(1,128)}', space=vmem, size = 0x9000, scoped, tag = 'internal scratch']
  %s0 = inlined_call_operand.vmem [shape: f32[64,32], index: 0, kind: input, shape index: {}]
  %s1 = inlined_call_operand.vmem [shape: f32[64,32], index: 1, kind: input, shape index: {}]
  %s2 = inlined_call_operand.hbm [shape: f32[1,8,128], index: 2, kind: output, shape index: {}]
  %s3 = sld [smem:[#allocation0]]
  $region30: #{tpu_custom_call.1} parent=0
    _
  %s5 = ssub.s32 1, %s3
  %s6 = scalar_select 0, %s5, %s3
  $region1: #{tpu_custom_call.1} parent=0
    #allocation2 [shape = 'u8[4096]{0}', space=vmem, size = 0x1000, scoped, tag = 'output window, operand 0, single buffered']
    #allocation3 [shape = 's32[1]{0}', space=sflag, size = 0x4, scoped, tag = 'scoped memory for tpu_custom_call.1']
    %7 = vsyncpa [#allocation3], 0
    // Predicated region
    $region2: #{tpu_custom_call.1} parent=1 // pred_check
      _
    $region3: #{tpu_custom_call.1} parent=1 // pred_check_branch
      %9 = sbr.rel (0) target = $region5
    $region4: #{tpu_custom_call.1} parent=1 // pred_region
      %s10 = sadd.s32 0, 0
      %p11 = scmp.lt.s32.totalorder %s10, 0
      %s12 = scalar_select %p11, %s10, 0
      %s13 = smul.u32 8, %s12
      %p14 = scmp.lt.s32.totalorder %s13, 7
      %s15 = scalar_select %p14, %s13, 7
      %s16 = smul.addr %s15, 8
      %s17 = scalar_lea.vmem %s0, %s16
      %s18 = sadd.s32 0, 0
      %p19 = scmp.lt.s32.totalorder %s18, 0
      %s20 = scalar_select %p19, %s18, 0
      %s21 = smul.u32 8, %s20
    $region5: #{tpu_custom_call.1} parent=1 // pred_fallthru
      _
    // Predicated region
    $region6: #{tpu_custom_call.1} parent=1 // pred_check
      _
    $region7: #{tpu_custom_call.1} parent=1 // pred_check_branch
      %23 = sbr.rel (0) target = $region9
    $region8: #{tpu_custom_call.1} parent=1 // pred_region
      %s24 = sadd.s32 0, 0
      %p25 = scmp.lt.s32.totalorder %s24, 0
      %s26 = scalar_select %p25, %s24, 0
      %s27 = smul.u32 8, %s26
      %p28 = scmp.lt.s32.totalorder %s27, 7
      %s29 = scalar_select %p28, %s27, 7
      %s30 = smul.addr %s29, 8
      %s31 = scalar_lea.vmem %s1, %s30
      %s32 = sadd.s32 0, 0
      %p33 = scmp.lt.s32.totalorder %s32, 0
      %s34 = scalar_select %p33, %s32, 0
      %s35 = smul.u32 8, %s34
    $region9: #{tpu_custom_call.1} parent=1 // pred_fallthru
      _
    %s36 = sadd.s32 0, 0
    %p37 = scmp.lt.s32.totalorder %s36, 0
    %s38 = scalar_select %p37, %s36, 0
    %s39 = smul.u32 8, %s38
    %p40 = scmp.lt.s32.totalorder %s39, 7
    %s41 = scalar_select %p40, %s39, 7
    %s42 = smul.addr %s41, 8
    %s43 = scalar_lea.vmem %s0, %s42
    %s44 = sadd.s32 0, 0
    %p45 = scmp.lt.s32.totalorder %s44, 0
    %s46 = scalar_select %p45, %s44, 0
    %s47 = smul.u32 8, %s46
    %p48 = scmp.lt.s32.totalorder %s47, 7
    %s49 = scalar_select %p48, %s47, 7
    %s50 = smul.addr %s49, 8
    %s51 = scalar_lea.vmem %s1, %s50
    %s52 = sadd.s32 0, 0
    %p53 = scmp.lt.s32.totalorder %s52, 0
    %s54 = scalar_select %p53, %s52, 0
    %s55 = smul.u32 8, %s54
    %p56 = scmp.lt.s32.totalorder %s55, 7
    %s57 = scalar_select %p56, %s55, 7
    %s58 = smul.addr %s57, 8
    %s59 = scalar_lea.vmem %s0, %s58
    %s60 = sadd.s32 0, 0
    %p61 = scmp.lt.s32.totalorder %s60, 0
    %s62 = scalar_select %p61, %s60, 0
    %s63 = smul.u32 8, %s62
    %s64 = sadd.s32 0, 0
    %p65 = scmp.lt.s32.totalorder %s64, 0
    %s66 = scalar_select %p65, %s64, 0
    %s67 = smul.u32 8, %s66
    %p68 = scmp.lt.s32.totalorder %s67, 7
    %s69 = scalar_select %p68, %s67, 7
    %s70 = smul.addr %s69, 8
    %s71 = scalar_lea.vmem %s1, %s70
    %s72 = sadd.s32 0, 0
    %p73 = scmp.lt.s32.totalorder %s72, 0
    %s74 = scalar_select %p73, %s72, 0
    %s75 = smul.u32 8, %s74
    %p76 = scmp.eq.s32.totalorder 0, 0
    // Predicated region
    $region10: #{tpu_custom_call.1} parent=1 // pred_check
      %p77 = pneg %p76
    $region11: #{tpu_custom_call.1} parent=1 // pred_check_branch
      %79 = sbr.rel (%p77) target = $region13
    $region12: #{tpu_custom_call.1} parent=1 // pred_region
      %80 = vst [vmem:[#allocation2] sm:$0xff] 0.0
    $region13: #{tpu_custom_call.1} parent=1 // pred_fallthru
      _
    %v81 = vld [vmem:[%s59] sm:$0xff]
    %v82 = vld [vmem:[%s59 + $0x8] sm:$0xff]
    %v83 = vld [vmem:[%s59 + $0x10] sm:$0xff]
    %v84 = vld [vmem:[%s59 + $0x18] sm:$0xff]
    %v85 = vld [vmem:[%s59 + $0x20] sm:$0xff]
    %v86 = vld [vmem:[%s59 + $0x28] sm:$0xff]
    %v87 = vld [vmem:[%s59 + $0x30] sm:$0xff]
    %v88 = vld [vmem:[%s59 + $0x38] sm:$0xff]
    %v89 = vld [vmem:[%s71] sm:$0xff]
    %v90 = vld [vmem:[%s71 + $0x8] sm:$0xff]
    %v91 = vld [vmem:[%s71 + $0x10] sm:$0xff]
    %v92 = vld [vmem:[%s71 + $0x18] sm:$0xff]
    %v93 = vld [vmem:[%s71 + $0x20] sm:$0xff]
    %v94 = vld [vmem:[%s71 + $0x28] sm:$0xff]
    %v95 = vld [vmem:[%s71 + $0x30] sm:$0xff]
    %v96 = vld [vmem:[%s71 + $0x38] sm:$0xff]
    %v97 = vsub.f32 %v81, %v89
    %v98 = vsub.f32 %v82, %v90
    %v99 = vsub.f32 %v83, %v91
    %v100 = vsub.f32 %v84, %v92
    %v101 = vsub.f32 %v85, %v93
    %v102 = vsub.f32 %v86, %v94
    %v103 = vsub.f32 %v87, %v95
    %v104 = vsub.f32 %v88, %v96
    %v105 = vmul.f32 %v97, %v97
    %v106 = vmul.f32 %v98, %v98
    %v107 = vmul.f32 %v99, %v99
    %v108 = vmul.f32 %v100, %v100
    %v109 = vmul.f32 %v101, %v101
    %v110 = vmul.f32 %v102, %v102
    %v111 = vmul.f32 %v103, %v103
    %v112 = vmul.f32 %v104, %v104
    %vm113 = vcmask 261120
    %v114 = vsel %vm113, %v105, 0.0
    %115 = vadd.xlane.f32.xlu0 %v114
    %v116 = vpop.xlane.xlu0 %115
    %v117 = vsel %vm113, %v106, 0.0
    %118 = vadd.xlane.f32.xlu0 %v117
    %v119 = vpop.xlane.xlu0 %118
    %v120 = vsel %vm113, %v107, 0.0
    %121 = vadd.xlane.f32.xlu0 %v120
    %v122 = vpop.xlane.xlu0 %121
    %v123 = vsel %vm113, %v108, 0.0
    %124 = vadd.xlane.f32.xlu0 %v123
    %v125 = vpop.xlane.xlu0 %124
    %v126 = vsel %vm113, %v109, 0.0
    %127 = vadd.xlane.f32.xlu0 %v126
    %v128 = vpop.xlane.xlu0 %127
    %v129 = vsel %vm113, %v110, 0.0
    %130 = vadd.xlane.f32.xlu0 %v129
    %v131 = vpop.xlane.xlu0 %130
    %v132 = vsel %vm113, %v111, 0.0
    %133 = vadd.xlane.f32.xlu0 %v132
    %v134 = vpop.xlane.xlu0 %133
    %v135 = vsel %vm113, %v112, 0.0
    %136 = vadd.xlane.f32.xlu0 %v135
    %v137 = vpop.xlane.xlu0 %136
    %v138 = vadd.f32 %v116, 1e-09
    %v139 = vadd.f32 %v119, 1e-09
    %v140 = vadd.f32 %v122, 1e-09
    %v141 = vadd.f32 %v125, 1e-09
    %v142 = vadd.f32 %v128, 1e-09
    %v143 = vadd.f32 %v131, 1e-09
    %v144 = vadd.f32 %v134, 1e-09
    %v145 = vadd.f32 %v137, 1e-09
    %v146 = vrsqrt.pop %v138
    %v147 = vmul.f32 %v146, %v138
    %v148 = vmul.f32 %v147, %v146
    %v149 = vmul.f32 0.5, %v148
    %v150 = vsub.f32 1.5, %v149
    %v151 = vmul.f32 %v146, %v150
    %v152 = vmul.f32 %v138, %v151
    %vm153 = vcmp.eq.f32.partialorder %v138, inf
    %v154 = vsel %vm153, %v138, %v152
    %vm155 = vcmp.eq.f32.partialorder %v138, 0.0
    %v156 = vand.u32 %v138, 2147483648
    %v157 = vsel %vm155, %v156, %v154
    %v158 = vrsqrt.pop %v139
    %v159 = vmul.f32 %v158, %v139
    %v160 = vmul.f32 %v159, %v158
    %v161 = vmul.f32 0.5, %v160
    %v162 = vsub.f32 1.5, %v161
    %v163 = vmul.f32 %v158, %v162
    %v164 = vmul.f32 %v139, %v163
    %vm165 = vcmp.eq.f32.partialorder %v139, inf
    %v166 = vsel %vm165, %v139, %v164
    %vm167 = vcmp.eq.f32.partialorder %v139, 0.0
    %v168 = vand.u32 %v139, 2147483648
    %v169 = vsel %vm167, %v168, %v166
    %v170 = vrsqrt.pop %v140
    %v171 = vmul.f32 %v170, %v140
    %v172 = vmul.f32 %v171, %v170
    %v173 = vmul.f32 0.5, %v172
    %v174 = vsub.f32 1.5, %v173
    %v175 = vmul.f32 %v170, %v174
    %v176 = vmul.f32 %v140, %v175
    %vm177 = vcmp.eq.f32.partialorder %v140, inf
    %v178 = vsel %vm177, %v140, %v176
    %vm179 = vcmp.eq.f32.partialorder %v140, 0.0
    %v180 = vand.u32 %v140, 2147483648
    %v181 = vsel %vm179, %v180, %v178
    %v182 = vrsqrt.pop %v141
    %v183 = vmul.f32 %v182, %v141
    %v184 = vmul.f32 %v183, %v182
    %v185 = vmul.f32 0.5, %v184
    %v186 = vsub.f32 1.5, %v185
    %v187 = vmul.f32 %v182, %v186
    %v188 = vmul.f32 %v141, %v187
    %vm189 = vcmp.eq.f32.partialorder %v141, inf
    %v190 = vsel %vm189, %v141, %v188
    %vm191 = vcmp.eq.f32.partialorder %v141, 0.0
    %v192 = vand.u32 %v141, 2147483648
    %v193 = vsel %vm191, %v192, %v190
    %v194 = vrsqrt.pop %v142
    %v195 = vmul.f32 %v194, %v142
    %v196 = vmul.f32 %v195, %v194
    %v197 = vmul.f32 0.5, %v196
    %v198 = vsub.f32 1.5, %v197
    %v199 = vmul.f32 %v194, %v198
    %v200 = vmul.f32 %v142, %v199
    %vm201 = vcmp.eq.f32.partialorder %v142, inf
    %v202 = vsel %vm201, %v142, %v200
    %vm203 = vcmp.eq.f32.partialorder %v142, 0.0
    %v204 = vand.u32 %v142, 2147483648
    %v205 = vsel %vm203, %v204, %v202
    %v206 = vrsqrt.pop %v143
    %v207 = vmul.f32 %v206, %v143
    %v208 = vmul.f32 %v207, %v206
    %v209 = vmul.f32 0.5, %v208
    %v210 = vsub.f32 1.5, %v209
    %v211 = vmul.f32 %v206, %v210
    %v212 = vmul.f32 %v143, %v211
    %vm213 = vcmp.eq.f32.partialorder %v143, inf
    %v214 = vsel %vm213, %v143, %v212
    %vm215 = vcmp.eq.f32.partialorder %v143, 0.0
    %v216 = vand.u32 %v143, 2147483648
    %v217 = vsel %vm215, %v216, %v214
    %v218 = vrsqrt.pop %v144
    %v219 = vmul.f32 %v218, %v144
    %v220 = vmul.f32 %v219, %v218
    %v221 = vmul.f32 0.5, %v220
    %v222 = vsub.f32 1.5, %v221
    %v223 = vmul.f32 %v218, %v222
    %v224 = vmul.f32 %v144, %v223
    %vm225 = vcmp.eq.f32.partialorder %v144, inf
    %v226 = vsel %vm225, %v144, %v224
    %vm227 = vcmp.eq.f32.partialorder %v144, 0.0
    %v228 = vand.u32 %v144, 2147483648
    %v229 = vsel %vm227, %v228, %v226
    %v230 = vrsqrt.pop %v145
    %v231 = vmul.f32 %v230, %v145
    %v232 = vmul.f32 %v231, %v230
    %v233 = vmul.f32 0.5, %v232
    %v234 = vsub.f32 1.5, %v233
    %v235 = vmul.f32 %v230, %v234
    %v236 = vmul.f32 %v145, %v235
    %vm237 = vcmp.eq.f32.partialorder %v145, inf
    %v238 = vsel %vm237, %v145, %v236
    %vm239 = vcmp.eq.f32.partialorder %v145, 0.0
    %v240 = vand.u32 %v145, 2147483648
    %v241 = vsel %vm239, %v240, %v238
    %v242 = vsub.f32 0.5, %v157
    %v243 = vsub.f32 0.5, %v169
    %v244 = vsub.f32 0.5, %v181
    %v245 = vsub.f32 0.5, %v193
    %v246 = vsub.f32 0.5, %v205
    %v247 = vsub.f32 0.5, %v217
    %v248 = vsub.f32 0.5, %v229
    %v249 = vsub.f32 0.5, %v241
    %v250 = vmax.f32 %v242, 0.0
    %v251 = vmax.f32 %v243, 0.0
    %v252 = vmax.f32 %v244, 0.0
    %v253 = vmax.f32 %v245, 0.0
    %v254 = vmax.f32 %v246, 0.0
    %v255 = vmax.f32 %v247, 0.0
    %v256 = vmax.f32 %v248, 0.0
    %v257 = vmax.f32 %v249, 0.0
    %v258 = vmul.f32 %v250, %v250
    %v259 = vmul.f32 %v251, %v251
    %v260 = vmul.f32 %v252, %v252
    %v261 = vmul.f32 %v253, %v253
    %v262 = vmul.f32 %v254, %v254
    %v263 = vmul.f32 %v255, %v255
    %v264 = vmul.f32 %v256, %v256
    %v265 = vmul.f32 %v257, %v257
    %s266 = sadd.s32 0, 0
    %s267 = smul.u32 %s266, 64
    %s268 = sadd.s32 %s267, 64
    %p269 = scmp.le.s32.totalorder %s268, 64
    // Predicated region
    $region14: #{tpu_custom_call.1} parent=1 // pred_check
      %p270 = pneg %p269
    $region15: #{tpu_custom_call.1} parent=1 // pred_check_branch
      %272 = sbr.rel (%p270) target = $region17
    $region16: #{tpu_custom_call.1} parent=1 // pred_region
      %v273 = vld [vmem:[#allocation2] sm:$0x1]
      %vm274 = vcmask 7168
      %v275 = vsel %vm274, %v258, 0.0
      %v276 = vsel %vm274, %v259, 0.0
      %v277 = vadd.f32 %v275, %v276
      %v278 = vsel %vm274, %v260, 0.0
      %v279 = vadd.f32 %v277, %v278
      %v280 = vsel %vm274, %v261, 0.0
      %v281 = vadd.f32 %v279, %v280
      %v282 = vsel %vm274, %v262, 0.0
      %v283 = vadd.f32 %v281, %v282
      %v284 = vsel %vm274, %v263, 0.0
      %v285 = vadd.f32 %v283, %v284
      %v286 = vsel %vm274, %v264, 0.0
      %v287 = vadd.f32 %v285, %v286
      %v288 = vsel %vm274, %v265, 0.0
      %v289 = vadd.f32 %v287, %v288
      %290 = vadd.xlane.f32.xlu0 %v289
      %v291 = vpop.xlane.xlu0 %290
      %v292 = vrot.slane %v291, 4
      %v293 = vadd.f32 %v291, %v292
      %v294 = vrot.slane %v293, 2
      %v295 = vadd.f32 %v293, %v294
      %v296 = vrot.slane %v295, 1
      %v297 = vadd.f32 %v295, %v296
      %s298 = vtos %v297
      %v299 = vstv %s298
      %v300 = vadd.f32 %v273, %v299
      %vm301 = vcmask 0
      %302 = vst.msk [vmem:[#allocation2] sm:$0x1] %vm301, %v300
    $region17: #{tpu_custom_call.1} parent=1 // pred_fallthru
      _
    %p303 = scmp.gt.s32.totalorder %s268, 64
    // Predicated region
    $region18: #{tpu_custom_call.1} parent=1 // pred_check
      %p304 = pneg %p303
    $region19: #{tpu_custom_call.1} parent=1 // pred_check_branch
      %306 = sbr.rel (%p304) target = $region21
    $region20: #{tpu_custom_call.1} parent=1 // pred_region
      %v307 = vlaneseq
      %v308 = vshrl.u32 %v307, 7
      %v309 = vadd.s32 %v308, 8
      %v310 = vadd.s32 %v308, 16
      %v311 = vadd.s32 %v308, 24
      %v312 = vadd.s32 %v308, 32
      %v313 = vadd.s32 %v308, 40
      %v314 = vadd.s32 %v308, 48
      %v315 = vadd.s32 %v308, 56
      %v316 = vstv %s267
      %v317 = vadd.s32 %v316, %v308
      %v318 = vadd.s32 %v316, %v309
      %v319 = vadd.s32 %v316, %v310
      %v320 = vadd.s32 %v316, %v311
      %v321 = vadd.s32 %v316, %v312
      %v322 = vadd.s32 %v316, %v313
      %v323 = vadd.s32 %v316, %v314
      %v324 = vadd.s32 %v316, %v315
      %vm325 = vcmp.lt.s32.totalorder %v317, 64
      %vm326 = vcmp.lt.s32.totalorder %v318, 64
      %vm327 = vcmp.lt.s32.totalorder %v319, 64
      %vm328 = vcmp.lt.s32.totalorder %v320, 64
      %vm329 = vcmp.lt.s32.totalorder %v321, 64
      %vm330 = vcmp.lt.s32.totalorder %v322, 64
      %vm331 = vcmp.lt.s32.totalorder %v323, 64
      %vm332 = vcmp.lt.s32.totalorder %v324, 64
      %v333 = vsel %vm325, %v258, 0.0
      %v334 = vsel %vm326, %v259, 0.0
      %v335 = vsel %vm327, %v260, 0.0
      %v336 = vsel %vm328, %v261, 0.0
      %v337 = vsel %vm329, %v262, 0.0
      %v338 = vsel %vm330, %v263, 0.0
      %v339 = vsel %vm331, %v264, 0.0
      %v340 = vsel %vm332, %v265, 0.0
      %v341 = vld [vmem:[#allocation2] sm:$0x1]
      %vm342 = vcmask 7168
      %v343 = vsel %vm342, %v333, 0.0
      %v344 = vsel %vm342, %v334, 0.0
      %v345 = vadd.f32 %v343, %v344
      %v346 = vsel %vm342, %v335, 0.0
      %v347 = vadd.f32 %v345, %v346
      %v348 = vsel %vm342, %v336, 0.0
      %v349 = vadd.f32 %v347, %v348
      %v350 = vsel %vm342, %v337, 0.0
      %v351 = vadd.f32 %v349, %v350
      %v352 = vsel %vm342, %v338, 0.0
      %v353 = vadd.f32 %v351, %v352
      %v354 = vsel %vm342, %v339, 0.0
      %v355 = vadd.f32 %v353, %v354
      %v356 = vsel %vm342, %v340, 0.0
      %v357 = vadd.f32 %v355, %v356
      %358 = vadd.xlane.f32.xlu0 %v357
      %v359 = vpop.xlane.xlu0 %358
      %v360 = vrot.slane %v359, 4
      %v361 = vadd.f32 %v359, %v360
      %v362 = vrot.slane %v361, 2
      %v363 = vadd.f32 %v361, %v362
      %v364 = vrot.slane %v363, 1
      %v365 = vadd.f32 %v363, %v364
      %s366 = vtos %v365
      %v367 = vstv %s366
      %v368 = vadd.f32 %v341, %v367
      %vm369 = vcmask 0
      %370 = vst.msk [vmem:[#allocation2] sm:$0x1] %vm369, %v368
    $region21: #{tpu_custom_call.1} parent=1 // pred_fallthru
      _
    // Predicated region
    $region22: #{tpu_custom_call.1} parent=1 // pred_check
      _
    $region23: #{tpu_custom_call.1} parent=1 // pred_check_branch
      %372 = sbr.rel (0) target = $region25
    $region24: #{tpu_custom_call.1} parent=1 // pred_region
      %374 = vsyncadd [#allocation3], 0
      %s376 = sshll.u32 [#allocation2], 4
      %s377 = int_to_ptr.vmem [resolvable:$true] %s376
      %s378 = sshll.u32 %s2, 4
      %s379 = int_to_ptr.hbm [resolvable:$true] %s378
      %381 = dma.vmem_to_hbm [thread:$0]  %s377, 128, %s379, [#allocation3]
    $region25: #{tpu_custom_call.1} parent=1 // pred_fallthru
      _
    // Predicated region
    $region26: #{tpu_custom_call.1} parent=1 // pred_check
      _
    $region27: #{tpu_custom_call.1} parent=1 // pred_check_branch
      %383 = sbr.rel (0) target = $region29
    $region28: #{tpu_custom_call.1} parent=1 // pred_region
      %385 = dma.done [#allocation3], 128
    $region29: #{tpu_custom_call.1} parent=1 // pred_fallthru
      _
    %386 = vsyncpa [#allocation3], 1

</llo_original>
